<compile_context>
chip_gen: v7x
topology: tpu7x:2x2x1
jax: 0.10.0
libtpu: 0.0.40
codegen_flags: <defaults>
</compile_context>

<pallas_src>
from functools import partial

import jax
import jax.numpy as jnp
from jax.experimental import pallas as pl
from jax.experimental.pallas import tpu as pltpu

HIDDEN_SIZE = 16
SRC_VOCAB = ['<BOS>', '<EOS>', '我', '爱', '你']
VOCAB_SIZE = len(SRC_VOCAB)
VOCAB_PAD = 8  # zero-cost padding to a friendly sublane count


def encoder_kernel(tok_ref, xw_ref, whh_ref, h_out_ref, *, seq_len, vocab_size):
    # tok_ref : SMEM (B*T,) int32      token ids, row-major (b, t) flatten (scalar path)
    # xw_ref  : VMEM (V_pad, 1, H) f32 pre-projected+bias-folded table  emb @ W_ih^T + b
    # whh_ref : VMEM (H, H) f32        W_hh^T
    # h_out   : VMEM (BB, H) f32       final hidden state for this batch block
    BB, H = h_out_ref.shape
    T = seq_len
    b0 = pl.program_id(0) * BB  # first batch row of this block

    whh = whh_ref[...]

    # --- hoisted input gather (prologue, off the serial chain) ---------------------------
    # Each row is a dynamic leading-axis read of the tiny table straight into vregs.
    x_steps = []
    for t in range(T):
        rows = []
        for b in range(BB):
            tok = tok_ref[(b0 + b) * T + t]
            # Clamp to the last *valid* vocab row; PyTorch nn.Embedding would raise on OOB
            # ids, here we keep memory safety with deterministic semantics instead.
            tok = jnp.clip(tok, 0, vocab_size - 1)
            rows.append(xw_ref[tok])  # (1, H)
        x_steps.append(jnp.concatenate(rows, axis=0) if BB > 1 else rows[0])  # (BB, H)

    # --- fully unrolled recurrence: one dependent MXU matmul + tanh per step -------------
    h = jnp.zeros((BB, H), jnp.float32)
    for t in range(T):
        h = jnp.tanh(x_steps[t] + jnp.dot(h, whh, preferred_element_type=jnp.float32))

    h_out_ref[...] = h


def encoder_forward(tokens, params, *, batch_block=None):
    """tokens: (B, T) int32 token ids. Returns hidden of shape (1, B, H)."""
    emb, wih, whh, b_ih, b_hh = params
    B, T = tokens.shape
    H = emb.shape[1]
    # Default: one batch block (one serial chain) — right answer on single-TC v5e/v6e.
    # On v7x pass batch_block=B//2 so the two TensorCores each get one chain.
    BB = B if batch_block is None else batch_block
    assert B % BB == 0, "batch must be divisible by the batch block"

    # Wrapper-side packing / constant folding (weight-only products, done once):
    #   xw[v] = emb[v] @ W_ih^T + (b_ih + b_hh);  padded rows carry just the bias.
    bias = (b_ih + b_hh).astype(jnp.float32).reshape(1, H)
    valid = jnp.dot(emb.astype(jnp.float32), wih.T.astype(jnp.float32)) + bias
    pad = jnp.broadcast_to(bias, (VOCAB_PAD - VOCAB_SIZE, H))
    xw = jnp.concatenate([valid, pad], axis=0).reshape(VOCAB_PAD, 1, H)
    whh_t = whh.T.astype(jnp.float32)
    tok_flat = tokens.reshape(B * T).astype(jnp.int32)  # scalar path (SMEM)

    h = pl.pallas_call(
        partial(encoder_kernel, seq_len=T, vocab_size=VOCAB_SIZE),
        out_shape=jax.ShapeDtypeStruct((B, H), jnp.float32),
        grid=(B // BB,),
        in_specs=[
            pl.BlockSpec(memory_space=pltpu.MemorySpace.SMEM),   # token ids (scalar path)
            pl.BlockSpec(memory_space=pltpu.MemorySpace.VMEM),   # emb @ W_ih^T + bias table
            pl.BlockSpec(memory_space=pltpu.MemorySpace.VMEM),   # W_hh^T
        ],
        out_specs=pl.BlockSpec((BB, H), lambda i: (i, 0)),
        compiler_params=pltpu.CompilerParams(
            dimension_semantics=("parallel",)),  # only matters if the batch is blocked (v7x)
    )(tok_flat, xw, whh_t)

    # PyTorch nn.RNN returns hidden with shape (num_layers=1, B, H)
    return h.reshape(1, B, H)


if __name__ == "__main__":
    key = jax.random.PRNGKey(0)
    k_emb, k_wih, k_whh, k_bih, k_bhh, k_tok = jax.random.split(key, 6)
    H = HIDDEN_SIZE
    bound = 1.0 / jnp.sqrt(jnp.float32(H))

    # deterministic synthetic parameters (shapes match nn.Embedding(5,16) + nn.RNN(16,16))
    emb = jax.random.normal(k_emb, (VOCAB_SIZE, H), jnp.float32)
    wih = jax.random.uniform(k_wih, (H, H), jnp.float32, -bound, bound)
    whh = jax.random.uniform(k_whh, (H, H), jnp.float32, -bound, bound)
    b_ih = jax.random.uniform(k_bih, (H,), jnp.float32, -bound, bound)
    b_hh = jax.random.uniform(k_bhh, (H,), jnp.float32, -bound, bound)
    params = (emb, wih, whh, b_ih, b_hh)

    B, T = 2, 8
    tokens = jax.random.randint(k_tok, (B, T), 0, VOCAB_SIZE, dtype=jnp.int32)

    hidden = encoder_forward(tokens, params)
    hidden = jax.block_until_ready(hidden)
    assert hidden.shape == (1, B, H)

    # pure-JAX reference for the same semantics
    def ref(tokens):
        x = emb[tokens]                      # (B, T, H)
        h = jnp.zeros((B, H), jnp.float32)
        for t in range(T):
            h = jnp.tanh(x[:, t] @ wih.T + h @ whh.T + b_ih + b_hh)
        return h.reshape(1, B, H)

    expected = ref(tokens)
    assert jnp.allclose(hidden, expected, atol=1e-5), "Pallas kernel mismatch vs reference"

    print("KERNEL_OK")
</pallas_src>

<mosaic_0001>
module attributes {stable_mosaic.version = 11 : i64} {
  func.func @encoder_kernel(%arg0: i32, %arg1: memref<16xi32, #tpu.memory_space<smem>>, %arg2: memref<8x1x16xf32, #tpu.memory_space<vmem>>, %arg3: memref<16x16xf32, #tpu.memory_space<vmem>>, %arg4: memref<2x16xf32, #tpu.memory_space<vmem>>) attributes {dimension_semantics = [#tpu.dimension_semantics<parallel>], iteration_bounds = array<i64: 1>, scalar_prefetch = 0 : i64, scratch_operands = 0 : i64, tpu.core_type = #tpu.core_type<tc>, window_params = [{transform_indices = @transform_0, window_bounds = array<i64: 16>}, {pipeline_mode = #tpu.pipeline_mode<synchronous>, transform_indices = @transform_1, window_bounds = array<i64: 8, 1, 16>}, {pipeline_mode = #tpu.pipeline_mode<synchronous>, transform_indices = @transform_2, window_bounds = array<i64: 16, 16>}, {transform_indices = @transform_3, window_bounds = array<i64: 2, 16>}]} {
    %c2_i32 = arith.constant 2 : i32
    %0 = arith.muli %arg0, %c2_i32 : i32
    %c0 = arith.constant 0 : index
    %c0_0 = arith.constant 0 : index
    %1 = vector.load %arg3[%c0, %c0_0] : memref<16x16xf32, #tpu.memory_space<vmem>>, vector<16x16xf32>
    %c0_i32 = arith.constant 0 : i32
    %2 = arith.addi %0, %c0_i32 : i32
    %c8_i32 = arith.constant 8 : i32
    %3 = arith.muli %2, %c8_i32 : i32
    %c0_i32_1 = arith.constant 0 : i32
    %4 = arith.addi %3, %c0_i32_1 : i32
    %5 = arith.index_cast %4 : i32 to index
    %6 = memref.load %arg1[%5] : memref<16xi32, #tpu.memory_space<smem>>
    %c0_i32_2 = arith.constant 0 : i32
    %c4_i32 = arith.constant 4 : i32
    %7 = arith.maxsi %c0_i32_2, %6 : i32
    %8 = arith.minsi %c4_i32, %7 : i32
    %9 = arith.index_cast %8 : i32 to index
    %c0_3 = arith.constant 0 : index
    %c0_4 = arith.constant 0 : index
    %10 = vector.load %arg2[%9, %c0_3, %c0_4] : memref<8x1x16xf32, #tpu.memory_space<vmem>>, vector<1x1x16xf32>
    %11 = vector.shape_cast %10 : vector<1x1x16xf32> to vector<1x16xf32>
    %c1_i32 = arith.constant 1 : i32
    %12 = arith.addi %0, %c1_i32 : i32
    %c8_i32_5 = arith.constant 8 : i32
    %13 = arith.muli %12, %c8_i32_5 : i32
    %c0_i32_6 = arith.constant 0 : i32
    %14 = arith.addi %13, %c0_i32_6 : i32
    %15 = arith.index_cast %14 : i32 to index
    %16 = memref.load %arg1[%15] : memref<16xi32, #tpu.memory_space<smem>>
    %c0_i32_7 = arith.constant 0 : i32
    %c4_i32_8 = arith.constant 4 : i32
    %17 = arith.maxsi %c0_i32_7, %16 : i32
    %18 = arith.minsi %c4_i32_8, %17 : i32
    %19 = arith.index_cast %18 : i32 to index
    %c0_9 = arith.constant 0 : index
    %c0_10 = arith.constant 0 : index
    %20 = vector.load %arg2[%19, %c0_9, %c0_10] : memref<8x1x16xf32, #tpu.memory_space<vmem>>, vector<1x1x16xf32>
    %21 = vector.shape_cast %20 : vector<1x1x16xf32> to vector<1x16xf32>
    %22 = tpu.concatenate %11, %21 in 0 : vector<1x16xf32>, vector<1x16xf32> -> vector<2x16xf32>
    %c0_i32_11 = arith.constant 0 : i32
    %23 = arith.addi %0, %c0_i32_11 : i32
    %c8_i32_12 = arith.constant 8 : i32
    %24 = arith.muli %23, %c8_i32_12 : i32
    %c1_i32_13 = arith.constant 1 : i32
    %25 = arith.addi %24, %c1_i32_13 : i32
    %26 = arith.index_cast %25 : i32 to index
    %27 = memref.load %arg1[%26] : memref<16xi32, #tpu.memory_space<smem>>
    %c0_i32_14 = arith.constant 0 : i32
    %c4_i32_15 = arith.constant 4 : i32
    %28 = arith.maxsi %c0_i32_14, %27 : i32
    %29 = arith.minsi %c4_i32_15, %28 : i32
    %30 = arith.index_cast %29 : i32 to index
    %c0_16 = arith.constant 0 : index
    %c0_17 = arith.constant 0 : index
    %31 = vector.load %arg2[%30, %c0_16, %c0_17] : memref<8x1x16xf32, #tpu.memory_space<vmem>>, vector<1x1x16xf32>
    %32 = vector.shape_cast %31 : vector<1x1x16xf32> to vector<1x16xf32>
    %c1_i32_18 = arith.constant 1 : i32
    %33 = arith.addi %0, %c1_i32_18 : i32
    %c8_i32_19 = arith.constant 8 : i32
    %34 = arith.muli %33, %c8_i32_19 : i32
    %c1_i32_20 = arith.constant 1 : i32
    %35 = arith.addi %34, %c1_i32_20 : i32
    %36 = arith.index_cast %35 : i32 to index
    %37 = memref.load %arg1[%36] : memref<16xi32, #tpu.memory_space<smem>>
    %c0_i32_21 = arith.constant 0 : i32
    %c4_i32_22 = arith.constant 4 : i32
    %38 = arith.maxsi %c0_i32_21, %37 : i32
    %39 = arith.minsi %c4_i32_22, %38 : i32
    %40 = arith.index_cast %39 : i32 to index
    %c0_23 = arith.constant 0 : index
    %c0_24 = arith.constant 0 : index
    %41 = vector.load %arg2[%40, %c0_23, %c0_24] : memref<8x1x16xf32, #tpu.memory_space<vmem>>, vector<1x1x16xf32>
    %42 = vector.shape_cast %41 : vector<1x1x16xf32> to vector<1x16xf32>
    %43 = tpu.concatenate %32, %42 in 0 : vector<1x16xf32>, vector<1x16xf32> -> vector<2x16xf32>
    %c0_i32_25 = arith.constant 0 : i32
    %44 = arith.addi %0, %c0_i32_25 : i32
    %c8_i32_26 = arith.constant 8 : i32
    %45 = arith.muli %44, %c8_i32_26 : i32
    %c2_i32_27 = arith.constant 2 : i32
    %46 = arith.addi %45, %c2_i32_27 : i32
    %47 = arith.index_cast %46 : i32 to index
    %48 = memref.load %arg1[%47] : memref<16xi32, #tpu.memory_space<smem>>
    %c0_i32_28 = arith.constant 0 : i32
    %c4_i32_29 = arith.constant 4 : i32
    %49 = arith.maxsi %c0_i32_28, %48 : i32
    %50 = arith.minsi %c4_i32_29, %49 : i32
    %51 = arith.index_cast %50 : i32 to index
    %c0_30 = arith.constant 0 : index
    %c0_31 = arith.constant 0 : index
    %52 = vector.load %arg2[%51, %c0_30, %c0_31] : memref<8x1x16xf32, #tpu.memory_space<vmem>>, vector<1x1x16xf32>
    %53 = vector.shape_cast %52 : vector<1x1x16xf32> to vector<1x16xf32>
    %c1_i32_32 = arith.constant 1 : i32
    %54 = arith.addi %0, %c1_i32_32 : i32
    %c8_i32_33 = arith.constant 8 : i32
    %55 = arith.muli %54, %c8_i32_33 : i32
    %c2_i32_34 = arith.constant 2 : i32
    %56 = arith.addi %55, %c2_i32_34 : i32
    %57 = arith.index_cast %56 : i32 to index
    %58 = memref.load %arg1[%57] : memref<16xi32, #tpu.memory_space<smem>>
    %c0_i32_35 = arith.constant 0 : i32
    %c4_i32_36 = arith.constant 4 : i32
    %59 = arith.maxsi %c0_i32_35, %58 : i32
    %60 = arith.minsi %c4_i32_36, %59 : i32
    %61 = arith.index_cast %60 : i32 to index
    %c0_37 = arith.constant 0 : index
    %c0_38 = arith.constant 0 : index
    %62 = vector.load %arg2[%61, %c0_37, %c0_38] : memref<8x1x16xf32, #tpu.memory_space<vmem>>, vector<1x1x16xf32>
    %63 = vector.shape_cast %62 : vector<1x1x16xf32> to vector<1x16xf32>
    %64 = tpu.concatenate %53, %63 in 0 : vector<1x16xf32>, vector<1x16xf32> -> vector<2x16xf32>
    %c0_i32_39 = arith.constant 0 : i32
    %65 = arith.addi %0, %c0_i32_39 : i32
    %c8_i32_40 = arith.constant 8 : i32
    %66 = arith.muli %65, %c8_i32_40 : i32
    %c3_i32 = arith.constant 3 : i32
    %67 = arith.addi %66, %c3_i32 : i32
    %68 = arith.index_cast %67 : i32 to index
    %69 = memref.load %arg1[%68] : memref<16xi32, #tpu.memory_space<smem>>
    %c0_i32_41 = arith.constant 0 : i32
    %c4_i32_42 = arith.constant 4 : i32
    %70 = arith.maxsi %c0_i32_41, %69 : i32
    %71 = arith.minsi %c4_i32_42, %70 : i32
    %72 = arith.index_cast %71 : i32 to index
    %c0_43 = arith.constant 0 : index
    %c0_44 = arith.constant 0 : index
    %73 = vector.load %arg2[%72, %c0_43, %c0_44] : memref<8x1x16xf32, #tpu.memory_space<vmem>>, vector<1x1x16xf32>
    %74 = vector.shape_cast %73 : vector<1x1x16xf32> to vector<1x16xf32>
    %c1_i32_45 = arith.constant 1 : i32
    %75 = arith.addi %0, %c1_i32_45 : i32
    %c8_i32_46 = arith.constant 8 : i32
    %76 = arith.muli %75, %c8_i32_46 : i32
    %c3_i32_47 = arith.constant 3 : i32
    %77 = arith.addi %76, %c3_i32_47 : i32
    %78 = arith.index_cast %77 : i32 to index
    %79 = memref.load %arg1[%78] : memref<16xi32, #tpu.memory_space<smem>>
    %c0_i32_48 = arith.constant 0 : i32
    %c4_i32_49 = arith.constant 4 : i32
    %80 = arith.maxsi %c0_i32_48, %79 : i32
    %81 = arith.minsi %c4_i32_49, %80 : i32
    %82 = arith.index_cast %81 : i32 to index
    %c0_50 = arith.constant 0 : index
    %c0_51 = arith.constant 0 : index
    %83 = vector.load %arg2[%82, %c0_50, %c0_51] : memref<8x1x16xf32, #tpu.memory_space<vmem>>, vector<1x1x16xf32>
    %84 = vector.shape_cast %83 : vector<1x1x16xf32> to vector<1x16xf32>
    %85 = tpu.concatenate %74, %84 in 0 : vector<1x16xf32>, vector<1x16xf32> -> vector<2x16xf32>
    %c0_i32_52 = arith.constant 0 : i32
    %86 = arith.addi %0, %c0_i32_52 : i32
    %c8_i32_53 = arith.constant 8 : i32
    %87 = arith.muli %86, %c8_i32_53 : i32
    %c4_i32_54 = arith.constant 4 : i32
    %88 = arith.addi %87, %c4_i32_54 : i32
    %89 = arith.index_cast %88 : i32 to index
    %90 = memref.load %arg1[%89] : memref<16xi32, #tpu.memory_space<smem>>
    %c0_i32_55 = arith.constant 0 : i32
    %c4_i32_56 = arith.constant 4 : i32
    %91 = arith.maxsi %c0_i32_55, %90 : i32
    %92 = arith.minsi %c4_i32_56, %91 : i32
    %93 = arith.index_cast %92 : i32 to index
    %c0_57 = arith.constant 0 : index
    %c0_58 = arith.constant 0 : index
    %94 = vector.load %arg2[%93, %c0_57, %c0_58] : memref<8x1x16xf32, #tpu.memory_space<vmem>>, vector<1x1x16xf32>
    %95 = vector.shape_cast %94 : vector<1x1x16xf32> to vector<1x16xf32>
    %c1_i32_59 = arith.constant 1 : i32
    %96 = arith.addi %0, %c1_i32_59 : i32
    %c8_i32_60 = arith.constant 8 : i32
    %97 = arith.muli %96, %c8_i32_60 : i32
    %c4_i32_61 = arith.constant 4 : i32
    %98 = arith.addi %97, %c4_i32_61 : i32
    %99 = arith.index_cast %98 : i32 to index
    %100 = memref.load %arg1[%99] : memref<16xi32, #tpu.memory_space<smem>>
    %c0_i32_62 = arith.constant 0 : i32
    %c4_i32_63 = arith.constant 4 : i32
    %101 = arith.maxsi %c0_i32_62, %100 : i32
    %102 = arith.minsi %c4_i32_63, %101 : i32
    %103 = arith.index_cast %102 : i32 to index
    %c0_64 = arith.constant 0 : index
    %c0_65 = arith.constant 0 : index
    %104 = vector.load %arg2[%103, %c0_64, %c0_65] : memref<8x1x16xf32, #tpu.memory_space<vmem>>, vector<1x1x16xf32>
    %105 = vector.shape_cast %104 : vector<1x1x16xf32> to vector<1x16xf32>
    %106 = tpu.concatenate %95, %105 in 0 : vector<1x16xf32>, vector<1x16xf32> -> vector<2x16xf32>
    %c0_i32_66 = arith.constant 0 : i32
    %107 = arith.addi %0, %c0_i32_66 : i32
    %c8_i32_67 = arith.constant 8 : i32
    %108 = arith.muli %107, %c8_i32_67 : i32
    %c5_i32 = arith.constant 5 : i32
    %109 = arith.addi %108, %c5_i32 : i32
    %110 = arith.index_cast %109 : i32 to index
    %111 = memref.load %arg1[%110] : memref<16xi32, #tpu.memory_space<smem>>
    %c0_i32_68 = arith.constant 0 : i32
    %c4_i32_69 = arith.constant 4 : i32
    %112 = arith.maxsi %c0_i32_68, %111 : i32
    %113 = arith.minsi %c4_i32_69, %112 : i32
    %114 = arith.index_cast %113 : i32 to index
    %c0_70 = arith.constant 0 : index
    %c0_71 = arith.constant 0 : index
    %115 = vector.load %arg2[%114, %c0_70, %c0_71] : memref<8x1x16xf32, #tpu.memory_space<vmem>>, vector<1x1x16xf32>
    %116 = vector.shape_cast %115 : vector<1x1x16xf32> to vector<1x16xf32>
    %c1_i32_72 = arith.constant 1 : i32
    %117 = arith.addi %0, %c1_i32_72 : i32
    %c8_i32_73 = arith.constant 8 : i32
    %118 = arith.muli %117, %c8_i32_73 : i32
    %c5_i32_74 = arith.constant 5 : i32
    %119 = arith.addi %118, %c5_i32_74 : i32
    %120 = arith.index_cast %119 : i32 to index
    %121 = memref.load %arg1[%120] : memref<16xi32, #tpu.memory_space<smem>>
    %c0_i32_75 = arith.constant 0 : i32
    %c4_i32_76 = arith.constant 4 : i32
    %122 = arith.maxsi %c0_i32_75, %121 : i32
    %123 = arith.minsi %c4_i32_76, %122 : i32
    %124 = arith.index_cast %123 : i32 to index
    %c0_77 = arith.constant 0 : index
    %c0_78 = arith.constant 0 : index
    %125 = vector.load %arg2[%124, %c0_77, %c0_78] : memref<8x1x16xf32, #tpu.memory_space<vmem>>, vector<1x1x16xf32>
    %126 = vector.shape_cast %125 : vector<1x1x16xf32> to vector<1x16xf32>
    %127 = tpu.concatenate %116, %126 in 0 : vector<1x16xf32>, vector<1x16xf32> -> vector<2x16xf32>
    %c0_i32_79 = arith.constant 0 : i32
    %128 = arith.addi %0, %c0_i32_79 : i32
    %c8_i32_80 = arith.constant 8 : i32
    %129 = arith.muli %128, %c8_i32_80 : i32
    %c6_i32 = arith.constant 6 : i32
    %130 = arith.addi %129, %c6_i32 : i32
    %131 = arith.index_cast %130 : i32 to index
    %132 = memref.load %arg1[%131] : memref<16xi32, #tpu.memory_space<smem>>
    %c0_i32_81 = arith.constant 0 : i32
    %c4_i32_82 = arith.constant 4 : i32
    %133 = arith.maxsi %c0_i32_81, %132 : i32
    %134 = arith.minsi %c4_i32_82, %133 : i32
    %135 = arith.index_cast %134 : i32 to index
    %c0_83 = arith.constant 0 : index
    %c0_84 = arith.constant 0 : index
    %136 = vector.load %arg2[%135, %c0_83, %c0_84] : memref<8x1x16xf32, #tpu.memory_space<vmem>>, vector<1x1x16xf32>
    %137 = vector.shape_cast %136 : vector<1x1x16xf32> to vector<1x16xf32>
    %c1_i32_85 = arith.constant 1 : i32
    %138 = arith.addi %0, %c1_i32_85 : i32
    %c8_i32_86 = arith.constant 8 : i32
    %139 = arith.muli %138, %c8_i32_86 : i32
    %c6_i32_87 = arith.constant 6 : i32
    %140 = arith.addi %139, %c6_i32_87 : i32
    %141 = arith.index_cast %140 : i32 to index
    %142 = memref.load %arg1[%141] : memref<16xi32, #tpu.memory_space<smem>>
    %c0_i32_88 = arith.constant 0 : i32
    %c4_i32_89 = arith.constant 4 : i32
    %143 = arith.maxsi %c0_i32_88, %142 : i32
    %144 = arith.minsi %c4_i32_89, %143 : i32
    %145 = arith.index_cast %144 : i32 to index
    %c0_90 = arith.constant 0 : index
    %c0_91 = arith.constant 0 : index
    %146 = vector.load %arg2[%145, %c0_90, %c0_91] : memref<8x1x16xf32, #tpu.memory_space<vmem>>, vector<1x1x16xf32>
    %147 = vector.shape_cast %146 : vector<1x1x16xf32> to vector<1x16xf32>
    %148 = tpu.concatenate %137, %147 in 0 : vector<1x16xf32>, vector<1x16xf32> -> vector<2x16xf32>
    %c0_i32_92 = arith.constant 0 : i32
    %149 = arith.addi %0, %c0_i32_92 : i32
    %c8_i32_93 = arith.constant 8 : i32
    %150 = arith.muli %149, %c8_i32_93 : i32
    %c7_i32 = arith.constant 7 : i32
    %151 = arith.addi %150, %c7_i32 : i32
    %152 = arith.index_cast %151 : i32 to index
    %153 = memref.load %arg1[%152] : memref<16xi32, #tpu.memory_space<smem>>
    %c0_i32_94 = arith.constant 0 : i32
    %c4_i32_95 = arith.constant 4 : i32
    %154 = arith.maxsi %c0_i32_94, %153 : i32
    %155 = arith.minsi %c4_i32_95, %154 : i32
    %156 = arith.index_cast %155 : i32 to index
    %c0_96 = arith.constant 0 : index
    %c0_97 = arith.constant 0 : index
    %157 = vector.load %arg2[%156, %c0_96, %c0_97] : memref<8x1x16xf32, #tpu.memory_space<vmem>>, vector<1x1x16xf32>
    %158 = vector.shape_cast %157 : vector<1x1x16xf32> to vector<1x16xf32>
    %c1_i32_98 = arith.constant 1 : i32
    %159 = arith.addi %0, %c1_i32_98 : i32
    %c8_i32_99 = arith.constant 8 : i32
    %160 = arith.muli %159, %c8_i32_99 : i32
    %c7_i32_100 = arith.constant 7 : i32
    %161 = arith.addi %160, %c7_i32_100 : i32
    %162 = arith.index_cast %161 : i32 to index
    %163 = memref.load %arg1[%162] : memref<16xi32, #tpu.memory_space<smem>>
    %c0_i32_101 = arith.constant 0 : i32
    %c4_i32_102 = arith.constant 4 : i32
    %164 = arith.maxsi %c0_i32_101, %163 : i32
    %165 = arith.minsi %c4_i32_102, %164 : i32
    %166 = arith.index_cast %165 : i32 to index
    %c0_103 = arith.constant 0 : index
    %c0_104 = arith.constant 0 : index
    %167 = vector.load %arg2[%166, %c0_103, %c0_104] : memref<8x1x16xf32, #tpu.memory_space<vmem>>, vector<1x1x16xf32>
    %168 = vector.shape_cast %167 : vector<1x1x16xf32> to vector<1x16xf32>
    %169 = tpu.concatenate %158, %168 in 0 : vector<1x16xf32>, vector<1x16xf32> -> vector<2x16xf32>
    %cst = arith.constant 0.000000e+00 : f32
    %170 = vector.broadcast %cst : f32 to vector<2x16xf32>
    %cst_105 = arith.constant dense<0.000000e+00> : vector<2x16xf32>
    %171 = tpu.matmul %170, %1, %cst_105 {dimension_numbers = #tpu.dot_dimension_numbers<[1], [0], [0], [1], [0, 0, 1, 1], [], []>} : vector<2x16xf32>, vector<16x16xf32>, vector<2x16xf32> -> vector<2x16xf32>
    %172 = arith.addf %22, %171 : vector<2x16xf32>
    %173 = math.tanh %172 : vector<2x16xf32>
    %cst_106 = arith.constant dense<0.000000e+00> : vector<2x16xf32>
    %174 = tpu.matmul %173, %1, %cst_106 {dimension_numbers = #tpu.dot_dimension_numbers<[1], [0], [0], [1], [0, 0, 1, 1], [], []>} : vector<2x16xf32>, vector<16x16xf32>, vector<2x16xf32> -> vector<2x16xf32>
    %175 = arith.addf %43, %174 : vector<2x16xf32>
    %176 = math.tanh %175 : vector<2x16xf32>
    %cst_107 = arith.constant dense<0.000000e+00> : vector<2x16xf32>
    %177 = tpu.matmul %176, %1, %cst_107 {dimension_numbers = #tpu.dot_dimension_numbers<[1], [0], [0], [1], [0, 0, 1, 1], [], []>} : vector<2x16xf32>, vector<16x16xf32>, vector<2x16xf32> -> vector<2x16xf32>
    %178 = arith.addf %64, %177 : vector<2x16xf32>
    %179 = math.tanh %178 : vector<2x16xf32>
    %cst_108 = arith.constant dense<0.000000e+00> : vector<2x16xf32>
    %180 = tpu.matmul %179, %1, %cst_108 {dimension_numbers = #tpu.dot_dimension_numbers<[1], [0], [0], [1], [0, 0, 1, 1], [], []>} : vector<2x16xf32>, vector<16x16xf32>, vector<2x16xf32> -> vector<2x16xf32>
    %181 = arith.addf %85, %180 : vector<2x16xf32>
    %182 = math.tanh %181 : vector<2x16xf32>
    %cst_109 = arith.constant dense<0.000000e+00> : vector<2x16xf32>
    %183 = tpu.matmul %182, %1, %cst_109 {dimension_numbers = #tpu.dot_dimension_numbers<[1], [0], [0], [1], [0, 0, 1, 1], [], []>} : vector<2x16xf32>, vector<16x16xf32>, vector<2x16xf32> -> vector<2x16xf32>
    %184 = arith.addf %106, %183 : vector<2x16xf32>
    %185 = math.tanh %184 : vector<2x16xf32>
    %cst_110 = arith.constant dense<0.000000e+00> : vector<2x16xf32>
    %186 = tpu.matmul %185, %1, %cst_110 {dimension_numbers = #tpu.dot_dimension_numbers<[1], [0], [0], [1], [0, 0, 1, 1], [], []>} : vector<2x16xf32>, vector<16x16xf32>, vector<2x16xf32> -> vector<2x16xf32>
    %187 = arith.addf %127, %186 : vector<2x16xf32>
    %188 = math.tanh %187 : vector<2x16xf32>
    %cst_111 = arith.constant dense<0.000000e+00> : vector<2x16xf32>
    %189 = tpu.matmul %188, %1, %cst_111 {dimension_numbers = #tpu.dot_dimension_numbers<[1], [0], [0], [1], [0, 0, 1, 1], [], []>} : vector<2x16xf32>, vector<16x16xf32>, vector<2x16xf32> -> vector<2x16xf32>
    %190 = arith.addf %148, %189 : vector<2x16xf32>
    %191 = math.tanh %190 : vector<2x16xf32>
    %cst_112 = arith.constant dense<0.000000e+00> : vector<2x16xf32>
    %192 = tpu.matmul %191, %1, %cst_112 {dimension_numbers = #tpu.dot_dimension_numbers<[1], [0], [0], [1], [0, 0, 1, 1], [], []>} : vector<2x16xf32>, vector<16x16xf32>, vector<2x16xf32> -> vector<2x16xf32>
    %193 = arith.addf %169, %192 : vector<2x16xf32>
    %194 = math.tanh %193 : vector<2x16xf32>
    %c0_113 = arith.constant 0 : index
    %c0_114 = arith.constant 0 : index
    %195 = vector.load %arg4[%c0_113, %c0_114] : memref<2x16xf32, #tpu.memory_space<vmem>>, vector<2x16xf32>
    tpu.vector_store %arg4[%c0_113, %c0_114], %194 {strides = array<i32>} : memref<2x16xf32, #tpu.memory_space<vmem>>, vector<2x16xf32>,
    return
  }
  func.func @transform_0(%arg0: i32) -> i32 {
    %c0_i32 = arith.constant 0 : i32
    %c0_i32_0 = arith.constant 0 : i32
    return %c0_i32 : i32
  }
  func.func @transform_1(%arg0: i32) -> (i32, i32, i32) {
    %c0_i32 = arith.constant 0 : i32
    %c0_i32_0 = arith.constant 0 : i32
    %c0_i32_1 = arith.constant 0 : i32
    %c0_i32_2 = arith.constant 0 : i32
    return %c0_i32, %c0_i32_0, %c0_i32_1 : i32, i32, i32
  }
  func.func @transform_2(%arg0: i32) -> (i32, i32) {
    %c0_i32 = arith.constant 0 : i32
    %c0_i32_0 = arith.constant 0 : i32
    %c0_i32_1 = arith.constant 0 : i32
    return %c0_i32, %c0_i32_0 : i32, i32
  }
  func.func @transform_3(%arg0: i32) -> (i32, i32) {
    %c0_i32 = arith.constant 0 : i32
    %c0_i32_0 = arith.constant 0 : i32
    return %arg0, %c0_i32 : i32, i32
  }
}

</mosaic_0001>

<llo_original>
// kernel: tpu_custom_call.1
$region0: #{tpu_custom_call.1}
  #allocation0 [shape = 'u32[]', space=smem, size = 0x4, offset = 0x4, fixed_abs, tag = 'smem constant byte address 0x4 - core index']
  #allocation1 [shape = 'u32[144,128]{1,0:T(1,128)}', space=vmem, size = 0x12000, scoped, tag = 'internal scratch']
  %s0 = inlined_call_operand.hbm [shape: s32[16], index: 0, kind: input, shape index: {}]
  %s1 = inlined_call_operand.hbm [shape: f32[8,1,16], index: 1, kind: input, shape index: {}]
  %s2 = inlined_call_operand.hbm [shape: f32[16,16], index: 2, kind: input, shape index: {}]
  %s3 = inlined_call_operand.hbm [shape: f32[2,16], index: 3, kind: output, shape index: {}]
  %s4 = sld [smem:[#allocation0]]
  $region34: #{tpu_custom_call.1} parent=0
    _
  %s6 = ssub.s32 1, %s4
  %s7 = scalar_select 0, %s6, %s4
  $region1: #{tpu_custom_call.1} parent=0
    #allocation2 [shape = 'u8[512]{0}', space=smem, size = 0x200, scoped, tag = 'input window, operand 0, single buffered']
    #allocation3 [shape = 's32[1]{0}', space=sflag, size = 0x4, scoped, tag = 'scoped memory for tpu_custom_call.1']
    #allocation4 [shape = 's32[1]{0}', space=sflag, size = 0x4, scoped, tag = 'scoped memory for tpu_custom_call.1']
    #allocation5 [shape = 's32[1]{0}', space=sflag, size = 0x4, scoped, tag = 'scoped memory for tpu_custom_call.1']
    #allocation6 [shape = 'u8[4096]{0}', space=vmem, size = 0x1000, scoped, tag = 'input window, operand 1, single buffered']
    #allocation7 [shape = 'u8[8192]{0}', space=vmem, size = 0x2000, scoped, tag = 'input window, operand 2, single buffered']
    #allocation8 [shape = 's32[1]{0}', space=sflag, size = 0x4, scoped, tag = 'scoped memory for tpu_custom_call.1']
    #allocation9 [shape = 'u8[1024]{0}', space=vmem, size = 0x400, scoped, tag = 'output window, operand 0, single buffered']
    %8 = vsyncpa [#allocation5], 0
    %9 = vsyncpa [#allocation3], 0
    %10 = vsyncpa [#allocation8], 0
    %11 = vsyncpa [#allocation4], 0
    // Predicated region
    $region2: #{tpu_custom_call.1} parent=1 // pred_check
      _
    $region3: #{tpu_custom_call.1} parent=1 // pred_check_branch
      %13 = sbr.rel (0) target = $region5
    $region4: #{tpu_custom_call.1} parent=1 // pred_region
      %s15 = ssub.s32 16, 16
      %16 = vsyncadd [#allocation5], %s15
      %19 = dma.hbm_to_smem %s0, 16, [#allocation2], [#allocation5]
    $region5: #{tpu_custom_call.1} parent=1 // pred_fallthru
      _
    // Predicated region
    $region6: #{tpu_custom_call.1} parent=1 // pred_check
      _
    $region7: #{tpu_custom_call.1} parent=1 // pred_check_branch
      %21 = sbr.rel (0) target = $region9
    $region8: #{tpu_custom_call.1} parent=1 // pred_region
      %s23 = ssub.s32 128, 128
      %24 = vsyncadd [#allocation3], %s23
      %s25 = sshll.u32 [#allocation6], 4
      %s26 = int_to_ptr.vmem [resolvable:$true] %s25
      %31 = dma.hbm_to_vmem [thread:$0]  %s1, 128, %s26, [#allocation3], 16, 16, 1
    $region9: #{tpu_custom_call.1} parent=1 // pred_fallthru
      _
    // Predicated region
    $region10: #{tpu_custom_call.1} parent=1 // pred_check
      _
    $region11: #{tpu_custom_call.1} parent=1 // pred_check_branch
      %33 = sbr.rel (0) target = $region13
    $region12: #{tpu_custom_call.1} parent=1 // pred_region
      %s35 = ssub.s32 256, 256
      %36 = vsyncadd [#allocation8], %s35
      %s37 = sshll.u32 [#allocation7], 4
      %s38 = int_to_ptr.vmem [resolvable:$true] %s37
      %43 = dma.hbm_to_vmem [thread:$0]  %s2, 256, %s38, [#allocation8], 128, 128, 8
    $region13: #{tpu_custom_call.1} parent=1 // pred_fallthru
      _
    // Predicated region
    $region14: #{tpu_custom_call.1} parent=1 // pred_check
      _
    $region15: #{tpu_custom_call.1} parent=1 // pred_check_branch
      %45 = sbr.rel (0) target = $region17
    $region16: #{tpu_custom_call.1} parent=1 // pred_region
      %46 = dma.done [#allocation5], 16
    $region17: #{tpu_custom_call.1} parent=1 // pred_fallthru
      _
    // Predicated region
    $region18: #{tpu_custom_call.1} parent=1 // pred_check
      _
    $region19: #{tpu_custom_call.1} parent=1 // pred_check_branch
      %48 = sbr.rel (0) target = $region21
    $region20: #{tpu_custom_call.1} parent=1 // pred_region
      %49 = dma.done [#allocation3], 128
    $region21: #{tpu_custom_call.1} parent=1 // pred_fallthru
      _
    // Predicated region
    $region22: #{tpu_custom_call.1} parent=1 // pred_check
      _
    $region23: #{tpu_custom_call.1} parent=1 // pred_check_branch
      %51 = sbr.rel (0) target = $region25
    $region24: #{tpu_custom_call.1} parent=1 // pred_region
      %52 = dma.done [#allocation8], 256
    $region25: #{tpu_custom_call.1} parent=1 // pred_fallthru
      _
    %53 = sfence
    %s54 = smul.u32 0, 2
    %v55 = vld [vmem:[#allocation7] sm:$0xff]
    %v56 = vld [vmem:[#allocation7 + $0x8] sm:$0xff]
    %s57 = smul.u32 0, 16
    %s58 = sld [smem:[#allocation2 + %s57]]
    %p59 = scmp.gt.s32.totalorder %s58, 0
    %s60 = scalar_select %p59, %s58, 0
    %p61 = scmp.lt.s32.totalorder %s60, 4
    %s62 = scalar_select %p61, %s60, 4
    %s63 = scalar_lea.vmem [#allocation6], %s62
    %v64 = vld [vmem:[%s63] sm:$0x1]
    %s65 = sadd.s32 %s54, 1
    %s66 = smul.u32 %s65, 8
    %s67 = sld [smem:[#allocation2 + %s66]]
    %p68 = scmp.gt.s32.totalorder %s67, 0
    %s69 = scalar_select %p68, %s67, 0
    %p70 = scmp.lt.s32.totalorder %s69, 4
    %s71 = scalar_select %p70, %s69, 4
    %s72 = scalar_lea.vmem [#allocation6], %s71
    %v73 = vld [vmem:[%s72] sm:$0x1]
    %v75 = vlaneseq
    %v76 = vshrl.u32 %v75, 7
    %v77 = vsub.s32 0, %v76
    %v78 = vrot.slane %v73, %v77
    %vm80 = vcmask 1040384
    %v81 = vsel %vm80, %v64, %v78
    %s82 = sadd.s32 %s57, 1
    %s83 = sld [smem:[#allocation2 + %s82]]
    %p84 = scmp.gt.s32.totalorder %s83, 0
    %s85 = scalar_select %p84, %s83, 0
    %p86 = scmp.lt.s32.totalorder %s85, 4
    %s87 = scalar_select %p86, %s85, 4
    %s88 = scalar_lea.vmem [#allocation6], %s87
    %v89 = vld [vmem:[%s88] sm:$0x1]
    %s90 = sadd.s32 %s66, 1
    %s91 = sld [smem:[#allocation2 + %s90]]
    %p92 = scmp.gt.s32.totalorder %s91, 0
    %s93 = scalar_select %p92, %s91, 0
    %p94 = scmp.lt.s32.totalorder %s93, 4
    %s95 = scalar_select %p94, %s93, 4
    %s96 = scalar_lea.vmem [#allocation6], %s95
    %v97 = vld [vmem:[%s96] sm:$0x1]
    %v99 = vlaneseq
    %v100 = vshrl.u32 %v99, 7
    %v101 = vsub.s32 0, %v100
    %v102 = vrot.slane %v97, %v101
    %v104 = vsel %vm80, %v89, %v102
    %s105 = sadd.s32 %s57, 2
    %s106 = sld [smem:[#allocation2 + %s105]]
    %p107 = scmp.gt.s32.totalorder %s106, 0
    %s108 = scalar_select %p107, %s106, 0
    %p109 = scmp.lt.s32.totalorder %s108, 4
    %s110 = scalar_select %p109, %s108, 4
    %s111 = scalar_lea.vmem [#allocation6], %s110
    %v112 = vld [vmem:[%s111] sm:$0x1]
    %s113 = sadd.s32 %s66, 2
    %s114 = sld [smem:[#allocation2 + %s113]]
    %p115 = scmp.gt.s32.totalorder %s114, 0
    %s116 = scalar_select %p115, %s114, 0
    %p117 = scmp.lt.s32.totalorder %s116, 4
    %s118 = scalar_select %p117, %s116, 4
    %s119 = scalar_lea.vmem [#allocation6], %s118
    %v120 = vld [vmem:[%s119] sm:$0x1]
    %v122 = vlaneseq
    %v123 = vshrl.u32 %v122, 7
    %v124 = vsub.s32 0, %v123
    %v125 = vrot.slane %v120, %v124
    %v127 = vsel %vm80, %v112, %v125
    %s128 = sadd.s32 %s57, 3
    %s129 = sld [smem:[#allocation2 + %s128]]
    %p130 = scmp.gt.s32.totalorder %s129, 0
    %s131 = scalar_select %p130, %s129, 0
    %p132 = scmp.lt.s32.totalorder %s131, 4
    %s133 = scalar_select %p132, %s131, 4
    %s134 = scalar_lea.vmem [#allocation6], %s133
    %v135 = vld [vmem:[%s134] sm:$0x1]
    %s136 = sadd.s32 %s66, 3
    %s137 = sld [smem:[#allocation2 + %s136]]
    %p138 = scmp.gt.s32.totalorder %s137, 0
    %s139 = scalar_select %p138, %s137, 0
    %p140 = scmp.lt.s32.totalorder %s139, 4
    %s141 = scalar_select %p140, %s139, 4
    %s142 = scalar_lea.vmem [#allocation6], %s141
    %v143 = vld [vmem:[%s142] sm:$0x1]
    %v145 = vlaneseq
    %v146 = vshrl.u32 %v145, 7
    %v147 = vsub.s32 0, %v146
    %v148 = vrot.slane %v143, %v147
    %v150 = vsel %vm80, %v135, %v148
    %s151 = sadd.s32 %s57, 4
    %s152 = sld [smem:[#allocation2 + %s151]]
    %p153 = scmp.gt.s32.totalorder %s152, 0
    %s154 = scalar_select %p153, %s152, 0
    %p155 = scmp.lt.s32.totalorder %s154, 4
    %s156 = scalar_select %p155, %s154, 4
    %s157 = scalar_lea.vmem [#allocation6], %s156
    %v158 = vld [vmem:[%s157] sm:$0x1]
    %s159 = sadd.s32 %s66, 4
    %s160 = sld [smem:[#allocation2 + %s159]]
    %p161 = scmp.gt.s32.totalorder %s160, 0
    %s162 = scalar_select %p161, %s160, 0
    %p163 = scmp.lt.s32.totalorder %s162, 4
    %s164 = scalar_select %p163, %s162, 4
    %s165 = scalar_lea.vmem [#allocation6], %s164
    %v166 = vld [vmem:[%s165] sm:$0x1]
    %v168 = vlaneseq
    %v169 = vshrl.u32 %v168, 7
    %v170 = vsub.s32 0, %v169
    %v171 = vrot.slane %v166, %v170
    %v173 = vsel %vm80, %v158, %v171
    %s174 = sadd.s32 %s57, 5
    %s175 = sld [smem:[#allocation2 + %s174]]
    %p176 = scmp.gt.s32.totalorder %s175, 0
    %s177 = scalar_select %p176, %s175, 0
    %p178 = scmp.lt.s32.totalorder %s177, 4
    %s179 = scalar_select %p178, %s177, 4
    %s180 = scalar_lea.vmem [#allocation6], %s179
    %v181 = vld [vmem:[%s180] sm:$0x1]
    %s182 = sadd.s32 %s66, 5
    %s183 = sld [smem:[#allocation2 + %s182]]
    %p184 = scmp.gt.s32.totalorder %s183, 0
    %s185 = scalar_select %p184, %s183, 0
    %p186 = scmp.lt.s32.totalorder %s185, 4
    %s187 = scalar_select %p186, %s185, 4
    %s188 = scalar_lea.vmem [#allocation6], %s187
    %v189 = vld [vmem:[%s188] sm:$0x1]
    %v191 = vlaneseq
    %v192 = vshrl.u32 %v191, 7
    %v193 = vsub.s32 0, %v192
    %v194 = vrot.slane %v189, %v193
    %v196 = vsel %vm80, %v181, %v194
    %s197 = sadd.s32 %s57, 6
    %s198 = sld [smem:[#allocation2 + %s197]]
    %p199 = scmp.gt.s32.totalorder %s198, 0
    %s200 = scalar_select %p199, %s198, 0
    %p201 = scmp.lt.s32.totalorder %s200, 4
    %s202 = scalar_select %p201, %s200, 4
    %s203 = scalar_lea.vmem [#allocation6], %s202
    %v204 = vld [vmem:[%s203] sm:$0x1]
    %s205 = sadd.s32 %s66, 6
    %s206 = sld [smem:[#allocation2 + %s205]]
    %p207 = scmp.gt.s32.totalorder %s206, 0
    %s208 = scalar_select %p207, %s206, 0
    %p209 = scmp.lt.s32.totalorder %s208, 4
    %s210 = scalar_select %p209, %s208, 4
    %s211 = scalar_lea.vmem [#allocation6], %s210
    %v212 = vld [vmem:[%s211] sm:$0x1]
    %v214 = vlaneseq
    %v215 = vshrl.u32 %v214, 7
    %v216 = vsub.s32 0, %v215
    %v217 = vrot.slane %v212, %v216
    %v219 = vsel %vm80, %v204, %v217
    %s220 = sadd.s32 %s57, 7
    %s221 = sld [smem:[#allocation2 + %s220]]
    %p222 = scmp.gt.s32.totalorder %s221, 0
    %s223 = scalar_select %p222, %s221, 0
    %p224 = scmp.lt.s32.totalorder %s223, 4
    %s225 = scalar_select %p224, %s223, 4
    %s226 = scalar_lea.vmem [#allocation6], %s225
    %v227 = vld [vmem:[%s226] sm:$0x1]
    %s228 = sadd.s32 %s66, 7
    %s229 = sld [smem:[#allocation2 + %s228]]
    %p230 = scmp.gt.s32.totalorder %s229, 0
    %s231 = scalar_select %p230, %s229, 0
    %p232 = scmp.lt.s32.totalorder %s231, 4
    %s233 = scalar_select %p232, %s231, 4
    %s234 = scalar_lea.vmem [#allocation6], %s233
    %v235 = vld [vmem:[%s234] sm:$0x1]
    %v237 = vlaneseq
    %v238 = vshrl.u32 %v237, 7
    %v239 = vsub.s32 0, %v238
    %v240 = vrot.slane %v235, %v239
    %v242 = vsel %vm80, %v227, %v240
    %vm243 = vcmask 130048
    %v245 = vsel %vm243, 0.0, 0
    %247 = vmatprep.subr.mxu0 0.0
    %248 = vmatpush1.msra.mxu0 %v55
    %249 = vmatprep.subr.mxu0 0.0
    %250 = vmatpush1.msra.mxu0 %v56
    %251 = vmatprep.subr.mxu0 0.0
    %252 = vmatpush1.msra.mxu0 0.0
    %253 = vmatprep.subr.mxu0 0.0
    %254 = vmatpush1.msra.mxu0 0.0
    %255 = vmatprep.subr.mxu0 0.0
    %256 = vmatpush1.msra.mxu0 0.0
    %257 = vmatprep.subr.mxu0 0.0
    %258 = vmatpush1.msra.mxu0 0.0
    %259 = vmatprep.subr.mxu0 0.0
    %260 = vmatpush1.msra.mxu0 0.0
    %261 = vmatprep.subr.mxu0 0.0
    %262 = vmatpush1.msra.mxu0 0.0
    %263 = vmatprep.subr.mxu0 0.0
    %264 = vmatpush1.msra.mxu0 0.0
    %265 = vmatprep.subr.mxu0 0.0
    %266 = vmatpush1.msra.mxu0 0.0
    %267 = vmatprep.subr.mxu0 0.0
    %268 = vmatpush1.msra.mxu0 0.0
    %269 = vmatprep.subr.mxu0 0.0
    %270 = vmatpush1.msra.mxu0 0.0
    %271 = vmatprep.subr.mxu0 0.0
    %272 = vmatpush1.msra.mxu0 0.0
    %273 = vmatprep.subr.mxu0 0.0
    %274 = vmatpush1.msra.mxu0 0.0
    %275 = vmatprep.subr.mxu0 0.0
    %276 = vmatpush1.msra.mxu0 0.0
    %277 = vmatprep.subr.mxu0 0.0
    %278 = vmatpush1.msra.mxu0 0.0
    %279 = vmatprep.subr.mxu0 0.0
    %280 = vmatpush1.msra.mxu0 0.0
    %281 = vmatprep.subr.mxu0 0.0
    %282 = vmatpush1.msra.mxu0 0.0
    %283 = vmatprep.subr.mxu0 0.0
    %284 = vmatpush1.msra.mxu0 0.0
    %285 = vmatprep.subr.mxu0 0.0
    %286 = vmatpush1.msra.mxu0 0.0
    %287 = vmatprep.subr.mxu0 0.0
    %288 = vmatpush1.msra.mxu0 0.0
    %289 = vmatprep.subr.mxu0 0.0
    %290 = vmatpush1.msra.mxu0 0.0
    %291 = vmatprep.subr.mxu0 0.0
    %292 = vmatpush1.msra.mxu0 0.0
    %293 = vmatprep.subr.mxu0 0.0
    %294 = vmatpush1.msra.mxu0 0.0
    %295 = vmatprep.subr.mxu0 0.0
    %296 = vmatpush1.msra.mxu0 0.0
    %297 = vmatprep.subr.mxu0 0.0
    %298 = vmatpush1.msra.mxu0 0.0
    %299 = vmatprep.subr.mxu0 0.0
    %300 = vmatpush1.msra.mxu0 0.0
    %301 = vmatprep.subr.mxu0 0.0
    %302 = vmatpush1.msra.mxu0 0.0
    %303 = vmatprep.subr.mxu0 0.0
    %304 = vmatpush1.msra.mxu0 0.0
    %305 = vmatprep.subr.mxu0 0.0
    %306 = vmatpush1.msra.mxu0 0.0
    %307 = vmatprep.subr.mxu0 0.0
    %308 = vmatpush1.msra.mxu0 0.0
    %309 = vmatprep.subr.mxu0 0.0
    %310 = vmatpush1.msra.mxu0 0.0
    %311 = vmatprep.mubr.f32.mxu0 0.0
    %312 = vmatmul.mubr.f32.gmra.mrb[0].mxu0 %v245
    %v313 = vpop.f32.mrb[0].mxu0
    %v314 = vadd.f32 0.0, %v313
    %v315 = vpop.f32.mrb[0].mxu0
    %316 = vdwg.mxu0
    %v317 = vadd.f32 %v81, %v314
    %v318 = vtanh.pop %v317
    %v320 = vsel %vm243, %v318, 0
    %322 = vmatprep.subr.mxu0 0.0
    %323 = vmatpush1.msra.mxu0 %v55
    %324 = vmatprep.subr.mxu0 0.0
    %325 = vmatpush1.msra.mxu0 %v56
    %326 = vmatprep.subr.mxu0 0.0
    %327 = vmatpush1.msra.mxu0 0.0
    %328 = vmatprep.subr.mxu0 0.0
    %329 = vmatpush1.msra.mxu0 0.0
    %330 = vmatprep.subr.mxu0 0.0
    %331 = vmatpush1.msra.mxu0 0.0
    %332 = vmatprep.subr.mxu0 0.0
    %333 = vmatpush1.msra.mxu0 0.0
    %334 = vmatprep.subr.mxu0 0.0
    %335 = vmatpush1.msra.mxu0 0.0
    %336 = vmatprep.subr.mxu0 0.0
    %337 = vmatpush1.msra.mxu0 0.0
    %338 = vmatprep.subr.mxu0 0.0
    %339 = vmatpush1.msra.mxu0 0.0
    %340 = vmatprep.subr.mxu0 0.0
    %341 = vmatpush1.msra.mxu0 0.0
    %342 = vmatprep.subr.mxu0 0.0
    %343 = vmatpush1.msra.mxu0 0.0
    %344 = vmatprep.subr.mxu0 0.0
    %345 = vmatpush1.msra.mxu0 0.0
    %346 = vmatprep.subr.mxu0 0.0
    %347 = vmatpush1.msra.mxu0 0.0
    %348 = vmatprep.subr.mxu0 0.0
    %349 = vmatpush1.msra.mxu0 0.0
    %350 = vmatprep.subr.mxu0 0.0
    %351 = vmatpush1.msra.mxu0 0.0
    %352 = vmatprep.subr.mxu0 0.0
    %353 = vmatpush1.msra.mxu0 0.0
    %354 = vmatprep.subr.mxu0 0.0
    %355 = vmatpush1.msra.mxu0 0.0
    %356 = vmatprep.subr.mxu0 0.0
    %357 = vmatpush1.msra.mxu0 0.0
    %358 = vmatprep.subr.mxu0 0.0
    %359 = vmatpush1.msra.mxu0 0.0
    %360 = vmatprep.subr.mxu0 0.0
    %361 = vmatpush1.msra.mxu0 0.0
    %362 = vmatprep.subr.mxu0 0.0
    %363 = vmatpush1.msra.mxu0 0.0
    %364 = vmatprep.subr.mxu0 0.0
    %365 = vmatpush1.msra.mxu0 0.0
    %366 = vmatprep.subr.mxu0 0.0
    %367 = vmatpush1.msra.mxu0 0.0
    %368 = vmatprep.subr.mxu0 0.0
    %369 = vmatpush1.msra.mxu0 0.0
    %370 = vmatprep.subr.mxu0 0.0
    %371 = vmatpush1.msra.mxu0 0.0
    %372 = vmatprep.subr.mxu0 0.0
    %373 = vmatpush1.msra.mxu0 0.0
    %374 = vmatprep.subr.mxu0 0.0
    %375 = vmatpush1.msra.mxu0 0.0
    %376 = vmatprep.subr.mxu0 0.0
    %377 = vmatpush1.msra.mxu0 0.0
    %378 = vmatprep.subr.mxu0 0.0
    %379 = vmatpush1.msra.mxu0 0.0
    %380 = vmatprep.subr.mxu0 0.0
    %381 = vmatpush1.msra.mxu0 0.0
    %382 = vmatprep.subr.mxu0 0.0
    %383 = vmatpush1.msra.mxu0 0.0
    %384 = vmatprep.subr.mxu0 0.0
    %385 = vmatpush1.msra.mxu0 0.0
    %386 = vmatprep.mubr.f32.mxu0 0.0
    %387 = vmatmul.mubr.f32.gmra.mrb[0].mxu0 %v320
    %v388 = vpop.f32.mrb[0].mxu0
    %v389 = vadd.f32 0.0, %v388
    %v390 = vpop.f32.mrb[0].mxu0
    %391 = vdwg.mxu0
    %v392 = vadd.f32 %v104, %v389
    %v393 = vtanh.pop %v392
    %v395 = vsel %vm243, %v393, 0
    %397 = vmatprep.subr.mxu0 0.0
    %398 = vmatpush1.msra.mxu0 %v55
    %399 = vmatprep.subr.mxu0 0.0
    %400 = vmatpush1.msra.mxu0 %v56
    %401 = vmatprep.subr.mxu0 0.0
    %402 = vmatpush1.msra.mxu0 0.0
    %403 = vmatprep.subr.mxu0 0.0
    %404 = vmatpush1.msra.mxu0 0.0
    %405 = vmatprep.subr.mxu0 0.0
    %406 = vmatpush1.msra.mxu0 0.0
    %407 = vmatprep.subr.mxu0 0.0
    %408 = vmatpush1.msra.mxu0 0.0
    %409 = vmatprep.subr.mxu0 0.0
    %410 = vmatpush1.msra.mxu0 0.0
    %411 = vmatprep.subr.mxu0 0.0
    %412 = vmatpush1.msra.mxu0 0.0
    %413 = vmatprep.subr.mxu0 0.0
    %414 = vmatpush1.msra.mxu0 0.0
    %415 = vmatprep.subr.mxu0 0.0
    %416 = vmatpush1.msra.mxu0 0.0
    %417 = vmatprep.subr.mxu0 0.0
    %418 = vmatpush1.msra.mxu0 0.0
    %419 = vmatprep.subr.mxu0 0.0
    %420 = vmatpush1.msra.mxu0 0.0
    %421 = vmatprep.subr.mxu0 0.0
    %422 = vmatpush1.msra.mxu0 0.0
    %423 = vmatprep.subr.mxu0 0.0
    %424 = vmatpush1.msra.mxu0 0.0
    %425 = vmatprep.subr.mxu0 0.0
    %426 = vmatpush1.msra.mxu0 0.0
    %427 = vmatprep.subr.mxu0 0.0
    %428 = vmatpush1.msra.mxu0 0.0
    %429 = vmatprep.subr.mxu0 0.0
    %430 = vmatpush1.msra.mxu0 0.0
    %431 = vmatprep.subr.mxu0 0.0
    %432 = vmatpush1.msra.mxu0 0.0
    %433 = vmatprep.subr.mxu0 0.0
    %434 = vmatpush1.msra.mxu0 0.0
    %435 = vmatprep.subr.mxu0 0.0
    %436 = vmatpush1.msra.mxu0 0.0
    %437 = vmatprep.subr.mxu0 0.0
    %438 = vmatpush1.msra.mxu0 0.0
    %439 = vmatprep.subr.mxu0 0.0
    %440 = vmatpush1.msra.mxu0 0.0
    %441 = vmatprep.subr.mxu0 0.0
    %442 = vmatpush1.msra.mxu0 0.0
    %443 = vmatprep.subr.mxu0 0.0
    %444 = vmatpush1.msra.mxu0 0.0
    %445 = vmatprep.subr.mxu0 0.0
    %446 = vmatpush1.msra.mxu0 0.0
    %447 = vmatprep.subr.mxu0 0.0
    %448 = vmatpush1.msra.mxu0 0.0
    %449 = vmatprep.subr.mxu0 0.0
    %450 = vmatpush1.msra.mxu0 0.0
    %451 = vmatprep.subr.mxu0 0.0
    %452 = vmatpush1.msra.mxu0 0.0
    %453 = vmatprep.subr.mxu0 0.0
    %454 = vmatpush1.msra.mxu0 0.0
    %455 = vmatprep.subr.mxu0 0.0
    %456 = vmatpush1.msra.mxu0 0.0
    %457 = vmatprep.subr.mxu0 0.0
    %458 = vmatpush1.msra.mxu0 0.0
    %459 = vmatprep.subr.mxu0 0.0
    %460 = vmatpush1.msra.mxu0 0.0
    %461 = vmatprep.mubr.f32.mxu0 0.0
    %462 = vmatmul.mubr.f32.gmra.mrb[0].mxu0 %v395
    %v463 = vpop.f32.mrb[0].mxu0
    %v464 = vadd.f32 0.0, %v463
    %v465 = vpop.f32.mrb[0].mxu0
    %466 = vdwg.mxu0
    %v467 = vadd.f32 %v127, %v464
    %v468 = vtanh.pop %v467
    %v470 = vsel %vm243, %v468, 0
    %472 = vmatprep.subr.mxu0 0.0
    %473 = vmatpush1.msra.mxu0 %v55
    %474 = vmatprep.subr.mxu0 0.0
    %475 = vmatpush1.msra.mxu0 %v56
    %476 = vmatprep.subr.mxu0 0.0
    %477 = vmatpush1.msra.mxu0 0.0
    %478 = vmatprep.subr.mxu0 0.0
    %479 = vmatpush1.msra.mxu0 0.0
    %480 = vmatprep.subr.mxu0 0.0
    %481 = vmatpush1.msra.mxu0 0.0
    %482 = vmatprep.subr.mxu0 0.0
    %483 = vmatpush1.msra.mxu0 0.0
    %484 = vmatprep.subr.mxu0 0.0
    %485 = vmatpush1.msra.mxu0 0.0
    %486 = vmatprep.subr.mxu0 0.0
    %487 = vmatpush1.msra.mxu0 0.0
    %488 = vmatprep.subr.mxu0 0.0
    %489 = vmatpush1.msra.mxu0 0.0
    %490 = vmatprep.subr.mxu0 0.0
    %491 = vmatpush1.msra.mxu0 0.0
    %492 = vmatprep.subr.mxu0 0.0
    %493 = vmatpush1.msra.mxu0 0.0
    %494 = vmatprep.subr.mxu0 0.0
    %495 = vmatpush1.msra.mxu0 0.0
    %496 = vmatprep.subr.mxu0 0.0
    %497 = vmatpush1.msra.mxu0 0.0
    %498 = vmatprep.subr.mxu0 0.0
    %499 = vmatpush1.msra.mxu0 0.0
    %500 = vmatprep.subr.mxu0 0.0
    %501 = vmatpush1.msra.mxu0 0.0
    %502 = vmatprep.subr.mxu0 0.0
    %503 = vmatpush1.msra.mxu0 0.0
    %504 = vmatprep.subr.mxu0 0.0
    %505 = vmatpush1.msra.mxu0 0.0
    %506 = vmatprep.subr.mxu0 0.0
    %507 = vmatpush1.msra.mxu0 0.0
    %508 = vmatprep.subr.mxu0 0.0
    %509 = vmatpush1.msra.mxu0 0.0
    %510 = vmatprep.subr.mxu0 0.0
    %511 = vmatpush1.msra.mxu0 0.0
    %512 = vmatprep.subr.mxu0 0.0
    %513 = vmatpush1.msra.mxu0 0.0
    %514 = vmatprep.subr.mxu0 0.0
    %515 = vmatpush1.msra.mxu0 0.0
    %516 = vmatprep.subr.mxu0 0.0
    %517 = vmatpush1.msra.mxu0 0.0
    %518 = vmatprep.subr.mxu0 0.0
    %519 = vmatpush1.msra.mxu0 0.0
    %520 = vmatprep.subr.mxu0 0.0
    %521 = vmatpush1.msra.mxu0 0.0
    %522 = vmatprep.subr.mxu0 0.0
    %523 = vmatpush1.msra.mxu0 0.0
    %524 = vmatprep.subr.mxu0 0.0
    %525 = vmatpush1.msra.mxu0 0.0
    %526 = vmatprep.subr.mxu0 0.0
    %527 = vmatpush1.msra.mxu0 0.0
    %528 = vmatprep.subr.mxu0 0.0
    %529 = vmatpush1.msra.mxu0 0.0
    %530 = vmatprep.subr.mxu0 0.0
    %531 = vmatpush1.msra.mxu0 0.0
    %532 = vmatprep.subr.mxu0 0.0
    %533 = vmatpush1.msra.mxu0 0.0
    %534 = vmatprep.subr.mxu0 0.0
    %535 = vmatpush1.msra.mxu0 0.0
    %536 = vmatprep.mubr.f32.mxu0 0.0
    %537 = vmatmul.mubr.f32.gmra.mrb[0].mxu0 %v470
    %v538 = vpop.f32.mrb[0].mxu0
    %v539 = vadd.f32 0.0, %v538
    %v540 = vpop.f32.mrb[0].mxu0
    %541 = vdwg.mxu0
    %v542 = vadd.f32 %v150, %v539
    %v543 = vtanh.pop %v542
    %v545 = vsel %vm243, %v543, 0
    %547 = vmatprep.subr.mxu0 0.0
    %548 = vmatpush1.msra.mxu0 %v55
    %549 = vmatprep.subr.mxu0 0.0
    %550 = vmatpush1.msra.mxu0 %v56
    %551 = vmatprep.subr.mxu0 0.0
    %552 = vmatpush1.msra.mxu0 0.0
    %553 = vmatprep.subr.mxu0 0.0
    %554 = vmatpush1.msra.mxu0 0.0
    %555 = vmatprep.subr.mxu0 0.0
    %556 = vmatpush1.msra.mxu0 0.0
    %557 = vmatprep.subr.mxu0 0.0
    %558 = vmatpush1.msra.mxu0 0.0
    %559 = vmatprep.subr.mxu0 0.0
    %560 = vmatpush1.msra.mxu0 0.0
    %561 = vmatprep.subr.mxu0 0.0
    %562 = vmatpush1.msra.mxu0 0.0
    %563 = vmatprep.subr.mxu0 0.0
    %564 = vmatpush1.msra.mxu0 0.0
    %565 = vmatprep.subr.mxu0 0.0
    %566 = vmatpush1.msra.mxu0 0.0
    %567 = vmatprep.subr.mxu0 0.0
    %568 = vmatpush1.msra.mxu0 0.0
    %569 = vmatprep.subr.mxu0 0.0
    %570 = vmatpush1.msra.mxu0 0.0
    %571 = vmatprep.subr.mxu0 0.0
    %572 = vmatpush1.msra.mxu0 0.0
    %573 = vmatprep.subr.mxu0 0.0
    %574 = vmatpush1.msra.mxu0 0.0
    %575 = vmatprep.subr.mxu0 0.0
    %576 = vmatpush1.msra.mxu0 0.0
    %577 = vmatprep.subr.mxu0 0.0
    %578 = vmatpush1.msra.mxu0 0.0
    %579 = vmatprep.subr.mxu0 0.0
    %580 = vmatpush1.msra.mxu0 0.0
    %581 = vmatprep.subr.mxu0 0.0
    %582 = vmatpush1.msra.mxu0 0.0
    %583 = vmatprep.subr.mxu0 0.0
    %584 = vmatpush1.msra.mxu0 0.0
    %585 = vmatprep.subr.mxu0 0.0
    %586 = vmatpush1.msra.mxu0 0.0
    %587 = vmatprep.subr.mxu0 0.0
    %588 = vmatpush1.msra.mxu0 0.0
    %589 = vmatprep.subr.mxu0 0.0
    %590 = vmatpush1.msra.mxu0 0.0
    %591 = vmatprep.subr.mxu0 0.0
    %592 = vmatpush1.msra.mxu0 0.0
    %593 = vmatprep.subr.mxu0 0.0
    %594 = vmatpush1.msra.mxu0 0.0
    %595 = vmatprep.subr.mxu0 0.0
    %596 = vmatpush1.msra.mxu0 0.0
    %597 = vmatprep.subr.mxu0 0.0
    %598 = vmatpush1.msra.mxu0 0.0
    %599 = vmatprep.subr.mxu0 0.0
    %600 = vmatpush1.msra.mxu0 0.0
    %601 = vmatprep.subr.mxu0 0.0
    %602 = vmatpush1.msra.mxu0 0.0
    %603 = vmatprep.subr.mxu0 0.0
    %604 = vmatpush1.msra.mxu0 0.0
    %605 = vmatprep.subr.mxu0 0.0
    %606 = vmatpush1.msra.mxu0 0.0
    %607 = vmatprep.subr.mxu0 0.0
    %608 = vmatpush1.msra.mxu0 0.0
    %609 = vmatprep.subr.mxu0 0.0
    %610 = vmatpush1.msra.mxu0 0.0
    %611 = vmatprep.mubr.f32.mxu0 0.0
    %612 = vmatmul.mubr.f32.gmra.mrb[0].mxu0 %v545
    %v613 = vpop.f32.mrb[0].mxu0
    %v614 = vadd.f32 0.0, %v613
    %v615 = vpop.f32.mrb[0].mxu0
    %616 = vdwg.mxu0
    %v617 = vadd.f32 %v173, %v614
    %v618 = vtanh.pop %v617
    %v620 = vsel %vm243, %v618, 0
    %622 = vmatprep.subr.mxu0 0.0
    %623 = vmatpush1.msra.mxu0 %v55
    %624 = vmatprep.subr.mxu0 0.0
    %625 = vmatpush1.msra.mxu0 %v56
    %626 = vmatprep.subr.mxu0 0.0
    %627 = vmatpush1.msra.mxu0 0.0
    %628 = vmatprep.subr.mxu0 0.0
    %629 = vmatpush1.msra.mxu0 0.0
    %630 = vmatprep.subr.mxu0 0.0
    %631 = vmatpush1.msra.mxu0 0.0
    %632 = vmatprep.subr.mxu0 0.0
    %633 = vmatpush1.msra.mxu0 0.0
    %634 = vmatprep.subr.mxu0 0.0
    %635 = vmatpush1.msra.mxu0 0.0
    %636 = vmatprep.subr.mxu0 0.0
    %637 = vmatpush1.msra.mxu0 0.0
    %638 = vmatprep.subr.mxu0 0.0
    %639 = vmatpush1.msra.mxu0 0.0
    %640 = vmatprep.subr.mxu0 0.0
    %641 = vmatpush1.msra.mxu0 0.0
    %642 = vmatprep.subr.mxu0 0.0
    %643 = vmatpush1.msra.mxu0 0.0
    %644 = vmatprep.subr.mxu0 0.0
    %645 = vmatpush1.msra.mxu0 0.0
    %646 = vmatprep.subr.mxu0 0.0
    %647 = vmatpush1.msra.mxu0 0.0
    %648 = vmatprep.subr.mxu0 0.0
    %649 = vmatpush1.msra.mxu0 0.0
    %650 = vmatprep.subr.mxu0 0.0
    %651 = vmatpush1.msra.mxu0 0.0
    %652 = vmatprep.subr.mxu0 0.0
    %653 = vmatpush1.msra.mxu0 0.0
    %654 = vmatprep.subr.mxu0 0.0
    %655 = vmatpush1.msra.mxu0 0.0
    %656 = vmatprep.subr.mxu0 0.0
    %657 = vmatpush1.msra.mxu0 0.0
    %658 = vmatprep.subr.mxu0 0.0
    %659 = vmatpush1.msra.mxu0 0.0
    %660 = vmatprep.subr.mxu0 0.0
    %661 = vmatpush1.msra.mxu0 0.0
    %662 = vmatprep.subr.mxu0 0.0
    %663 = vmatpush1.msra.mxu0 0.0
    %664 = vmatprep.subr.mxu0 0.0
    %665 = vmatpush1.msra.mxu0 0.0
    %666 = vmatprep.subr.mxu0 0.0
    %667 = vmatpush1.msra.mxu0 0.0
    %668 = vmatprep.subr.mxu0 0.0
    %669 = vmatpush1.msra.mxu0 0.0
    %670 = vmatprep.subr.mxu0 0.0
    %671 = vmatpush1.msra.mxu0 0.0
    %672 = vmatprep.subr.mxu0 0.0
    %673 = vmatpush1.msra.mxu0 0.0
    %674 = vmatprep.subr.mxu0 0.0
    %675 = vmatpush1.msra.mxu0 0.0
    %676 = vmatprep.subr.mxu0 0.0
    %677 = vmatpush1.msra.mxu0 0.0
    %678 = vmatprep.subr.mxu0 0.0
    %679 = vmatpush1.msra.mxu0 0.0
    %680 = vmatprep.subr.mxu0 0.0
    %681 = vmatpush1.msra.mxu0 0.0
    %682 = vmatprep.subr.mxu0 0.0
    %683 = vmatpush1.msra.mxu0 0.0
    %684 = vmatprep.subr.mxu0 0.0
    %685 = vmatpush1.msra.mxu0 0.0
    %686 = vmatprep.mubr.f32.mxu0 0.0
    %687 = vmatmul.mubr.f32.gmra.mrb[0].mxu0 %v620
    %v688 = vpop.f32.mrb[0].mxu0
    %v689 = vadd.f32 0.0, %v688
    %v690 = vpop.f32.mrb[0].mxu0
    %691 = vdwg.mxu0
    %v692 = vadd.f32 %v196, %v689
    %v693 = vtanh.pop %v692
    %v695 = vsel %vm243, %v693, 0
    %697 = vmatprep.subr.mxu0 0.0
    %698 = vmatpush1.msra.mxu0 %v55
    %699 = vmatprep.subr.mxu0 0.0
    %700 = vmatpush1.msra.mxu0 %v56
    %701 = vmatprep.subr.mxu0 0.0
    %702 = vmatpush1.msra.mxu0 0.0
    %703 = vmatprep.subr.mxu0 0.0
    %704 = vmatpush1.msra.mxu0 0.0
    %705 = vmatprep.subr.mxu0 0.0
    %706 = vmatpush1.msra.mxu0 0.0
    %707 = vmatprep.subr.mxu0 0.0
    %708 = vmatpush1.msra.mxu0 0.0
    %709 = vmatprep.subr.mxu0 0.0
    %710 = vmatpush1.msra.mxu0 0.0
    %711 = vmatprep.subr.mxu0 0.0
    %712 = vmatpush1.msra.mxu0 0.0
    %713 = vmatprep.subr.mxu0 0.0
    %714 = vmatpush1.msra.mxu0 0.0
    %715 = vmatprep.subr.mxu0 0.0
    %716 = vmatpush1.msra.mxu0 0.0
    %717 = vmatprep.subr.mxu0 0.0
    %718 = vmatpush1.msra.mxu0 0.0
    %719 = vmatprep.subr.mxu0 0.0
    %720 = vmatpush1.msra.mxu0 0.0
    %721 = vmatprep.subr.mxu0 0.0
    %722 = vmatpush1.msra.mxu0 0.0
    %723 = vmatprep.subr.mxu0 0.0
    %724 = vmatpush1.msra.mxu0 0.0
    %725 = vmatprep.subr.mxu0 0.0
    %726 = vmatpush1.msra.mxu0 0.0
    %727 = vmatprep.subr.mxu0 0.0
    %728 = vmatpush1.msra.mxu0 0.0
    %729 = vmatprep.subr.mxu0 0.0
    %730 = vmatpush1.msra.mxu0 0.0
    %731 = vmatprep.subr.mxu0 0.0
    %732 = vmatpush1.msra.mxu0 0.0
    %733 = vmatprep.subr.mxu0 0.0
    %734 = vmatpush1.msra.mxu0 0.0
    %735 = vmatprep.subr.mxu0 0.0
    %736 = vmatpush1.msra.mxu0 0.0
    %737 = vmatprep.subr.mxu0 0.0
    %738 = vmatpush1.msra.mxu0 0.0
    %739 = vmatprep.subr.mxu0 0.0
    %740 = vmatpush1.msra.mxu0 0.0
    %741 = vmatprep.subr.mxu0 0.0
    %742 = vmatpush1.msra.mxu0 0.0
    %743 = vmatprep.subr.mxu0 0.0
    %744 = vmatpush1.msra.mxu0 0.0
    %745 = vmatprep.subr.mxu0 0.0
    %746 = vmatpush1.msra.mxu0 0.0
    %747 = vmatprep.subr.mxu0 0.0
    %748 = vmatpush1.msra.mxu0 0.0
    %749 = vmatprep.subr.mxu0 0.0
    %750 = vmatpush1.msra.mxu0 0.0
    %751 = vmatprep.subr.mxu0 0.0
    %752 = vmatpush1.msra.mxu0 0.0
    %753 = vmatprep.subr.mxu0 0.0
    %754 = vmatpush1.msra.mxu0 0.0
    %755 = vmatprep.subr.mxu0 0.0
    %756 = vmatpush1.msra.mxu0 0.0
    %757 = vmatprep.subr.mxu0 0.0
    %758 = vmatpush1.msra.mxu0 0.0
    %759 = vmatprep.subr.mxu0 0.0
    %760 = vmatpush1.msra.mxu0 0.0
    %761 = vmatprep.mubr.f32.mxu0 0.0
    %762 = vmatmul.mubr.f32.gmra.mrb[0].mxu0 %v695
    %v763 = vpop.f32.mrb[0].mxu0
    %v764 = vadd.f32 0.0, %v763
    %v765 = vpop.f32.mrb[0].mxu0
    %766 = vdwg.mxu0
    %v767 = vadd.f32 %v219, %v764
    %v768 = vtanh.pop %v767
    %v770 = vsel %vm243, %v768, 0
    %772 = vmatprep.subr.mxu0 0.0
    %773 = vmatpush1.msra.mxu0 %v55
    %774 = vmatprep.subr.mxu0 0.0
    %775 = vmatpush1.msra.mxu0 %v56
    %776 = vmatprep.subr.mxu0 0.0
    %777 = vmatpush1.msra.mxu0 0.0
    %778 = vmatprep.subr.mxu0 0.0
    %779 = vmatpush1.msra.mxu0 0.0
    %780 = vmatprep.subr.mxu0 0.0
    %781 = vmatpush1.msra.mxu0 0.0
    %782 = vmatprep.subr.mxu0 0.0
    %783 = vmatpush1.msra.mxu0 0.0
    %784 = vmatprep.subr.mxu0 0.0
    %785 = vmatpush1.msra.mxu0 0.0
    %786 = vmatprep.subr.mxu0 0.0
    %787 = vmatpush1.msra.mxu0 0.0
    %788 = vmatprep.subr.mxu0 0.0
    %789 = vmatpush1.msra.mxu0 0.0
    %790 = vmatprep.subr.mxu0 0.0
    %791 = vmatpush1.msra.mxu0 0.0
    %792 = vmatprep.subr.mxu0 0.0
    %793 = vmatpush1.msra.mxu0 0.0
    %794 = vmatprep.subr.mxu0 0.0
    %795 = vmatpush1.msra.mxu0 0.0
    %796 = vmatprep.subr.mxu0 0.0
    %797 = vmatpush1.msra.mxu0 0.0
    %798 = vmatprep.subr.mxu0 0.0
    %799 = vmatpush1.msra.mxu0 0.0
    %800 = vmatprep.subr.mxu0 0.0
    %801 = vmatpush1.msra.mxu0 0.0
    %802 = vmatprep.subr.mxu0 0.0
    %803 = vmatpush1.msra.mxu0 0.0
    %804 = vmatprep.subr.mxu0 0.0
    %805 = vmatpush1.msra.mxu0 0.0
    %806 = vmatprep.subr.mxu0 0.0
    %807 = vmatpush1.msra.mxu0 0.0
    %808 = vmatprep.subr.mxu0 0.0
    %809 = vmatpush1.msra.mxu0 0.0
    %810 = vmatprep.subr.mxu0 0.0
    %811 = vmatpush1.msra.mxu0 0.0
    %812 = vmatprep.subr.mxu0 0.0
    %813 = vmatpush1.msra.mxu0 0.0
    %814 = vmatprep.subr.mxu0 0.0
    %815 = vmatpush1.msra.mxu0 0.0
    %816 = vmatprep.subr.mxu0 0.0
    %817 = vmatpush1.msra.mxu0 0.0
    %818 = vmatprep.subr.mxu0 0.0
    %819 = vmatpush1.msra.mxu0 0.0
    %820 = vmatprep.subr.mxu0 0.0
    %821 = vmatpush1.msra.mxu0 0.0
    %822 = vmatprep.subr.mxu0 0.0
    %823 = vmatpush1.msra.mxu0 0.0
    %824 = vmatprep.subr.mxu0 0.0
    %825 = vmatpush1.msra.mxu0 0.0
    %826 = vmatprep.subr.mxu0 0.0
    %827 = vmatpush1.msra.mxu0 0.0
    %828 = vmatprep.subr.mxu0 0.0
    %829 = vmatpush1.msra.mxu0 0.0
    %830 = vmatprep.subr.mxu0 0.0
    %831 = vmatpush1.msra.mxu0 0.0
    %832 = vmatprep.subr.mxu0 0.0
    %833 = vmatpush1.msra.mxu0 0.0
    %834 = vmatprep.subr.mxu0 0.0
    %835 = vmatpush1.msra.mxu0 0.0
    %836 = vmatprep.mubr.f32.mxu0 0.0
    %837 = vmatmul.mubr.f32.gmra.mrb[0].mxu0 %v770
    %v838 = vpop.f32.mrb[0].mxu0
    %v839 = vadd.f32 0.0, %v838
    %v840 = vpop.f32.mrb[0].mxu0
    %841 = vdwg.mxu0
    %v842 = vadd.f32 %v242, %v839
    %v843 = vtanh.pop %v842
    %vm844 = vcmask 123904
    %845 = vst.msk [vmem:[#allocation9] sm:$0x3] %vm844, %v843
    // Predicated region
    $region26: #{tpu_custom_call.1} parent=1 // pred_check
      _
    $region27: #{tpu_custom_call.1} parent=1 // pred_check_branch
      %847 = sbr.rel (0) target = $region29
    $region28: #{tpu_custom_call.1} parent=1 // pred_region
      %s849 = ssub.s32 32, 32
      %850 = vsyncadd [#allocation4], %s849
      %s852 = sshll.u32 [#allocation9], 4
      %s853 = int_to_ptr.vmem [resolvable:$true] %s852
      %855 = dma.vmem_to_hbm [thread:$0]  %s853, 32, %s3, [#allocation4]
    $region29: #{tpu_custom_call.1} parent=1 // pred_fallthru
      _
    // Predicated region
    $region30: #{tpu_custom_call.1} parent=1 // pred_check
      _
    $region31: #{tpu_custom_call.1} parent=1 // pred_check_branch
      %857 = sbr.rel (0) target = $region33
    $region32: #{tpu_custom_call.1} parent=1 // pred_region
      %858 = dma.done [#allocation4], 32
    $region33: #{tpu_custom_call.1} parent=1 // pred_fallthru
      _
    %859 = vsyncpa [#allocation3], 1
    %860 = vsyncpa [#allocation8], 1
    %861 = vsyncpa [#allocation4], 1
    %862 = vsyncpa [#allocation5], 1

</llo_original>
